<compile_context>
chip_gen: v5e
topology: v5e:2x2
jax: 0.10.0
libtpu: 0.0.40
codegen_flags: <defaults>
</compile_context>

<pallas_src>
import functools

import jax
import jax.numpy as jnp
from jax.experimental import pallas as pl
from jax.experimental.pallas import tpu as pltpu


_MIB = 1024 * 1024


def _round_up(v, m):
    return -(-v // m) * m


def _vmem_capacity_bytes() -> int:
    try:
        return int(pltpu.get_tpu_info().vmem_capacity_bytes)
    except Exception:
        return 64 * _MIB  # conservative default (v7x per-core VMEM)


# ------------------------------------------------------------------
# Fused single-pass kernel: whole (N, C, HW) array resident in VMEM.
# ------------------------------------------------------------------
def _fused_kernel(x_ref, o_ref):
    x = x_ref[...]                                                   # (N, C, HW)
    mn = jnp.min(jnp.min(x, axis=-1, keepdims=True), axis=0, keepdims=True)
    mx = jnp.max(jnp.max(x, axis=-1, keepdims=True), axis=0, keepdims=True)
    mn = mn.astype(jnp.float32)
    mx = mx.astype(jnp.float32)
    inv = 1.0 / jnp.maximum(mx - mn, 1e-4)                           # (1, C, 1)
    bias = -mn * inv - 0.5
    o_ref[...] = (x.astype(jnp.float32) * inv + bias).astype(o_ref.dtype)


# ------------------------------------------------------------------
# Pass 1: per-(n, c) row partial min/max over lane tiles of (N*C, HW).
# Grid = (splits, tiles_per_split): splits is "parallel" (megacore work even
# at N=1), tile axis "arbitrary" with the (1, NC, 1) output blocks resident.
# Only the globally-last tile runs the remainder lane mask (lax.cond).
# ------------------------------------------------------------------
def _minmax_reduce_kernel(x_ref, mn_ref, mx_ref, *, tiles_per_split,
                          num_tiles, tile_hw, hw, has_remainder):
    s = pl.program_id(0)
    j = pl.program_id(1)
    x = x_ref[...]                                                   # (NC, T)

    def _full(xv):
        return (jnp.min(xv, axis=-1, keepdims=True),
                jnp.max(xv, axis=-1, keepdims=True))

    if has_remainder:  # static: only trace mask ops when a remainder exists
        valid = hw - (num_tiles - 1) * tile_hw                       # static

        def _masked(xv):
            lane = jax.lax.broadcasted_iota(jnp.int32, xv.shape, xv.ndim - 1)
            inb = lane < valid
            big = jnp.asarray(jnp.inf, xv.dtype)
            return (jnp.min(jnp.where(inb, xv, big), axis=-1, keepdims=True),
                    jnp.max(jnp.where(inb, xv, -big), axis=-1, keepdims=True))

        global_tile = s * tiles_per_split + j
        tile_min, tile_max = jax.lax.cond(
            global_tile == num_tiles - 1, _masked, _full, x)
    else:
        tile_min, tile_max = _full(x)

    @pl.when(j == 0)
    def _():
        mn_ref[...] = tile_min[None]
        mx_ref[...] = tile_max[None]

    @pl.when(j > 0)
    def _():
        mn_ref[...] = jnp.minimum(mn_ref[...], tile_min[None])
        mx_ref[...] = jnp.maximum(mx_ref[...], tile_max[None])


# ------------------------------------------------------------------
# Pass 2: elementwise  out = x * inv + bias  (per-row f32 inv / bias).
# ------------------------------------------------------------------
def _normalize_kernel(x_ref, inv_ref, bias_ref, o_ref):
    x = x_ref[...].astype(jnp.float32)
    o_ref[...] = (x * inv_ref[...] + bias_ref[...]).astype(o_ref.dtype)


def min_max_scaler(x: jax.Array, *, allow_fused: bool = True) -> jax.Array:
    """x: (N, C, H, W) floating -> (N, C, H, W), per-channel min-max scaled."""
    n, c, h, w = x.shape
    hw = h * w
    nc = n * c
    dtype = x.dtype
    itemsize = jnp.dtype(dtype).itemsize
    sub = max(8, 32 // itemsize)                 # sublane packing: 8/16/32

    phys = _vmem_capacity_bytes()

    # ---------------- fused single-pass path ----------------
    # Footprint ~ in + out (input dtype) + one f32 temp, with VMEM tile padding
    # (C -> sublane multiple, HW -> lane multiple) accounted for.
    fused_limit = min(int(phys * 0.85), phys - 8 * _MIB)
    padded_elems = n * _round_up(c, sub) * _round_up(hw, 128)
    fused_peak = padded_elems * (2 * itemsize + 4)
    if allow_fused and fused_peak <= int(fused_limit * 0.9):
        out3 = pl.pallas_call(
            _fused_kernel,
            out_shape=jax.ShapeDtypeStruct((n, c, hw), dtype),
            compiler_params=pltpu.CompilerParams(
                vmem_limit_bytes=fused_limit),
        )(x.reshape(n, c, hw))
        return out3.reshape(n, c, h, w)

    # ---------------- tiled two-pass path ----------------
    # 2-D native layout (contiguous -> free reshape); per-channel combine is
    # done outside on tiny per-row partials.
    x2 = x.reshape(nc, hw)

    # Block bytes sized so pass 2 (2 in-bufs + 2 out-bufs + ~1 f32 temp per
    # live block + tiny inv/bias) fits the granted VMEM limit.
    tiled_limit = min(int(phys * 0.75), 96 * _MIB)   # v7x ~48 MiB, v5e/v6e 96
    block_budget = max(1 * _MIB, min(8 * _MIB, tiled_limit // 7))
    padded_rows = _round_up(nc, sub)
    tile_hw = max(128, (block_budget // (padded_rows * itemsize)) // 128 * 128)
    if tile_hw >= hw:
        tile_hw = hw                              # single full-extent lane block
        num_tiles = 1
    else:
        num_tiles = pl.cdiv(hw, tile_hw)
    has_remainder = num_tiles > 1 and (hw % tile_hw) != 0

    block_bytes = padded_rows * _round_up(tile_hw, 128) * itemsize
    # For extreme N*C even a 128-lane block may exceed the budget; in that case
    # we simply grant more VMEM (rows could additionally be tiled if needed).
    vmem_limit = min(max(tiled_limit, 7 * block_bytes + 2 * _MIB),
                     int(phys * 0.9))

    # Split the tile axis so the "parallel" grid axis feeds both TensorCores
    # (v7x megacore) even when N is small; splits must divide num_tiles.
    num_splits = 1
    if num_tiles > 1:
        for d in (8, 6, 4, 3, 2):
            if num_tiles % d == 0:
                num_splits = d
                break
    tiles_per_split = num_tiles // num_splits

    reduce_kernel = functools.partial(
        _minmax_reduce_kernel, tiles_per_split=tiles_per_split,
        num_tiles=num_tiles, tile_hw=tile_hw, hw=hw,
        has_remainder=has_remainder)

    # Pass 1: per-row (i.e. per (n, c)) partial min / max, one slot per split.
    part_mn, part_mx = pl.pallas_call(
        reduce_kernel,
        out_shape=(jax.ShapeDtypeStruct((num_splits, nc, 1), dtype),
                   jax.ShapeDtypeStruct((num_splits, nc, 1), dtype)),
        grid_spec=pltpu.PrefetchScalarGridSpec(
            num_scalar_prefetch=0,
            grid=(num_splits, tiles_per_split),
            in_specs=[pl.BlockSpec(
                (nc, tile_hw),
                lambda s, j, T=tiles_per_split: (0, s * T + j))],
            out_specs=(pl.BlockSpec((1, nc, 1), lambda s, j: (s, 0, 0)),
                       pl.BlockSpec((1, nc, 1), lambda s, j: (s, 0, 0))),
        ),
        compiler_params=pltpu.CompilerParams(
            dimension_semantics=("parallel", "arbitrary"),
            vmem_limit_bytes=vmem_limit),
    )(x2)

    # Tiny per-channel combine in float32 outside the kernels.
    mn_c = jnp.min(part_mn.reshape(num_splits, n, c).astype(jnp.float32),
                   axis=(0, 1))                                       # (C,)
    mx_c = jnp.max(part_mx.reshape(num_splits, n, c).astype(jnp.float32),
                   axis=(0, 1))
    inv_c = 1.0 / jnp.maximum(mx_c - mn_c, 1e-4)
    bias_c = -mn_c * inv_c - 0.5
    inv_rows = jnp.broadcast_to(inv_c[None, :], (n, c)).reshape(nc, 1)
    bias_rows = jnp.broadcast_to(bias_c[None, :], (n, c)).reshape(nc, 1)

    # Pass 2: out = x * inv + bias, in the same 2-D layout.
    out2 = pl.pallas_call(
        _normalize_kernel,
        out_shape=jax.ShapeDtypeStruct((nc, hw), dtype),
        grid_spec=pltpu.PrefetchScalarGridSpec(
            num_scalar_prefetch=0,
            grid=(num_tiles,),
            in_specs=[pl.BlockSpec((nc, tile_hw), lambda j: (0, j)),
                      pl.BlockSpec((nc, 1), lambda j: (0, 0)),
                      pl.BlockSpec((nc, 1), lambda j: (0, 0))],
            out_specs=pl.BlockSpec((nc, tile_hw), lambda j: (0, j)),
        ),
        compiler_params=pltpu.CompilerParams(
            dimension_semantics=("parallel",),
            vmem_limit_bytes=vmem_limit),
    )(x2, inv_rows, bias_rows)

    return out2.reshape(n, c, h, w)


def _reference(x):
    c = x.shape[1]
    flat = jnp.transpose(x, (1, 0, 2, 3)).reshape(c, -1)
    mn = flat.min(axis=-1).reshape(1, c, 1, 1)
    scale = flat.max(axis=-1).reshape(1, c, 1, 1) - mn
    return (x - mn) / jnp.maximum(scale, 1e-4) - 0.5


if __name__ == "__main__":
    key = jax.random.PRNGKey(0)
    x = jax.random.normal(key, (2, 4, 16, 16), dtype=jnp.float32)

    ref = _reference(x)

    # Fused single-pass path (default for this small input).
    out_fused = jax.block_until_ready(min_max_scaler(x))
    assert out_fused.shape == x.shape and out_fused.dtype == x.dtype
    assert jnp.allclose(out_fused, ref, atol=1e-5, rtol=1e-5), (
        float(jnp.max(jnp.abs(out_fused - ref))))

    # Tiled two-pass path (forced, to cover the large-input route).
    out_tiled = jax.block_until_ready(min_max_scaler(x, allow_fused=False))
    assert out_tiled.shape == x.shape and out_tiled.dtype == x.dtype
    assert jnp.allclose(out_tiled, ref, atol=1e-5, rtol=1e-5), (
        float(jnp.max(jnp.abs(out_tiled - ref))))

    print("KERNEL_OK")
</pallas_src>

<mosaic_0001>
module attributes {stable_mosaic.version = 11 : i64} {
  func.func @_fused_kernel(%arg0: memref<2x4x256xf32, #tpu.memory_space<vmem>>, %arg1: memref<2x4x256xf32, #tpu.memory_space<vmem>>) attributes {dimension_semantics = [], scalar_prefetch = 0 : i64, scratch_operands = 0 : i64, tpu.core_type = #tpu.core_type<tc>} {
    %c0 = arith.constant 0 : index
    %c0_0 = arith.constant 0 : index
    %c0_1 = arith.constant 0 : index
    %0 = vector.load %arg0[%c0, %c0_0, %c0_1] : memref<2x4x256xf32, #tpu.memory_space<vmem>>, vector<2x4x256xf32>
    %cst = arith.constant dense<0x7F800000> : vector<2x4xf32>
    %1 = vector.multi_reduction <minimumf>, %0, %cst [2] : vector<2x4x256xf32> to vector<2x4xf32>
    %2 = vector.shape_cast %1 : vector<2x4xf32> to vector<2x4x1xf32>
    %cst_2 = arith.constant dense<0x7F800000> : vector<4x1xf32>
    %3 = vector.multi_reduction <minimumf>, %2, %cst_2 [0] : vector<2x4x1xf32> to vector<4x1xf32>
    %4 = vector.shape_cast %3 : vector<4x1xf32> to vector<1x4x1xf32>
    %cst_3 = arith.constant dense<0xFF800000> : vector<2x4xf32>
    %5 = vector.multi_reduction <maximumf>, %0, %cst_3 [2] : vector<2x4x256xf32> to vector<2x4xf32>
    %6 = vector.shape_cast %5 : vector<2x4xf32> to vector<2x4x1xf32>
    %cst_4 = arith.constant dense<0xFF800000> : vector<4x1xf32>
    %7 = vector.multi_reduction <maximumf>, %6, %cst_4 [0] : vector<2x4x1xf32> to vector<4x1xf32>
    %8 = vector.shape_cast %7 : vector<4x1xf32> to vector<1x4x1xf32>
    %9 = arith.subf %8, %4 : vector<1x4x1xf32>
    %cst_5 = arith.constant 9.99999974E-5 : f32
    %10 = vector.broadcast %cst_5 : f32 to vector<1x4x1xf32>
    %11 = arith.maximumf %9, %10 : vector<1x4x1xf32>
    %cst_6 = arith.constant 1.000000e+00 : f32
    %12 = vector.broadcast %cst_6 : f32 to vector<1x4x1xf32>
    %13 = arith.divf %12, %11 : vector<1x4x1xf32>
    %cst_7 = arith.constant 0.000000e+00 : f32
    %14 = vector.broadcast %cst_7 : f32 to vector<1x4x1xf32>
    %15 = arith.subf %14, %4 : vector<1x4x1xf32>
    %16 = arith.mulf %15, %13 : vector<1x4x1xf32>
    %cst_8 = arith.constant 5.000000e-01 : f32
    %17 = vector.broadcast %cst_8 : f32 to vector<1x4x1xf32>
    %18 = arith.subf %16, %17 : vector<1x4x1xf32>
    %19 = vector.broadcast %13 : vector<1x4x1xf32> to vector<2x4x256xf32>
    %20 = arith.mulf %0, %19 : vector<2x4x256xf32>
    %21 = vector.broadcast %18 : vector<1x4x1xf32> to vector<2x4x256xf32>
    %22 = arith.addf %20, %21 : vector<2x4x256xf32>
    %c0_9 = arith.constant 0 : index
    %c0_10 = arith.constant 0 : index
    %c0_11 = arith.constant 0 : index
    %23 = vector.load %arg1[%c0_9, %c0_10, %c0_11] : memref<2x4x256xf32, #tpu.memory_space<vmem>>, vector<2x4x256xf32>
    tpu.vector_store %arg1[%c0_9, %c0_10, %c0_11], %22 {strides = array<i32>} : memref<2x4x256xf32, #tpu.memory_space<vmem>>, vector<2x4x256xf32>,
    return
  }
}

</mosaic_0001>

<llo_original>
// kernel: tpu_custom_call.1
$region0: #{tpu_custom_call.1}
  #allocation0 [shape = 'u32[]', space=smem, size = 0x4, offset = 0x4, fixed_abs, tag = 'smem constant byte address 0x4 - core index']
  #allocation1 [shape = 'u32[72,128]{1,0:T(1,128)}', space=vmem, size = 0x9000, scoped, tag = 'internal scratch']
  %s0 = inlined_call_operand.hbm [shape: f32[2,4,256], index: 0, kind: input, shape index: {}]
  %s1 = inlined_call_operand.hbm [shape: f32[2,4,256], index: 1, kind: output, shape index: {}]
  %s2 = sld [smem:[#allocation0]]
  $region18: #{tpu_custom_call.1} parent=0
    _
  %s4 = ssub.s32 1, %s2
  %s5 = scalar_select 0, %s4, %s2
  $region1: #{tpu_custom_call.1} parent=0
    #allocation2 [shape = 'u8[8192]{0}', space=vmem, size = 0x2000, scoped, tag = 'input window, operand 0, single buffered']
    #allocation3 [shape = 's32[1]{0}', space=sflag, size = 0x4, scoped, tag = 'scoped memory for tpu_custom_call.1']
    #allocation4 [shape = 's32[1]{0}', space=sflag, size = 0x4, scoped, tag = 'scoped memory for tpu_custom_call.1']
    #allocation5 [shape = 'u8[8192]{0}', space=vmem, size = 0x2000, scoped, tag = 'output window, operand 0, single buffered']
    %6 = vsyncpa [#allocation3], 0
    %7 = vsyncpa [#allocation4], 0
    // Predicated region
    $region2: #{tpu_custom_call.1} parent=1 // pred_check
      _
    $region3: #{tpu_custom_call.1} parent=1 // pred_check_branch
      %9 = sbr.rel (0) target = $region5
    $region4: #{tpu_custom_call.1} parent=1 // pred_region
      %11 = vsyncadd [#allocation3], 0
      %s12 = sshll.u32 %s0, 4
      %s13 = int_to_ptr.hbm [resolvable:$true] %s12
      %s14 = sshll.u32 [#allocation2], 4
      %s15 = int_to_ptr.vmem [resolvable:$true] %s14
      %20 = dma.hbm_to_vmem [thread:$0]  %s13, 256, %s15, [#allocation3], 128, 128, 8
    $region5: #{tpu_custom_call.1} parent=1 // pred_fallthru
      _
    // Predicated region
    $region6: #{tpu_custom_call.1} parent=1 // pred_check
      _
    $region7: #{tpu_custom_call.1} parent=1 // pred_check_branch
      %22 = sbr.rel (0) target = $region9
    $region8: #{tpu_custom_call.1} parent=1 // pred_region
      %24 = dma.done [#allocation3], 256
    $region9: #{tpu_custom_call.1} parent=1 // pred_fallthru
      _
    %v25 = vld [vmem:[#allocation2] sm:$0xff]
    %v26 = vld [vmem:[#allocation2 + $0x8] sm:$0xff]
    %29 = vst [vmem:[#allocation1] ss:$2 sm:$0xff] %v25
    %v30 = vld.sshfl [vmem:[#allocation1] sm:$0xff pattern:$0x75316420]
    %v31 = vld.sshfl [vmem:[#allocation1 + $0x8] sm:$0xff pattern:$0x75316420]
    %s32 = scalar_lea.vmem [#allocation1], 16
    %33 = vst [vmem:[%s32] ss:$2 sm:$0xff] %v26
    %v34 = vld.sshfl [vmem:[#allocation1 + $0x10] sm:$0xff pattern:$0x75316420]
    %v35 = vld.sshfl [vmem:[#allocation1 + $0x18] sm:$0xff pattern:$0x75316420]
    %vm40 = vcmask 1043456
    %v41 = vsel %vm40, %v30, inf
    %v42 = vsel %vm40, %v31, inf
    %v43 = vmin.f32 %v41, %v42
    %44 = vmin.xlane.f32.xlu0 %v43
    %v45 = vpop.xlane.xlu0 %44
    %v46 = vsel %vm40, %v34, inf
    %v47 = vsel %vm40, %v35, inf
    %v48 = vmin.f32 %v46, %v47
    %49 = vmin.xlane.f32.xlu0 %v48
    %v50 = vpop.xlane.xlu0 %49
    %v51 = vsel %vm40, %v45, inf
    %v52 = vsel %vm40, %v50, inf
    %v53 = vmin.f32 %v51, %v52
    %54 = vst [vmem:[#allocation1] ss:$2 sm:$0xff] %v25
    %v55 = vld.sshfl [vmem:[#allocation1] sm:$0xff pattern:$0x75316420]
    %v56 = vld.sshfl [vmem:[#allocation1 + $0x8] sm:$0xff pattern:$0x75316420]
    %s57 = scalar_lea.vmem [#allocation1], 16
    %58 = vst [vmem:[%s57] ss:$2 sm:$0xff] %v26
    %v59 = vld.sshfl [vmem:[#allocation1 + $0x10] sm:$0xff pattern:$0x75316420]
    %v60 = vld.sshfl [vmem:[#allocation1 + $0x18] sm:$0xff pattern:$0x75316420]
    %v65 = vsel %vm40, %v55, -inf
    %v66 = vsel %vm40, %v56, -inf
    %v67 = vmax.f32 %v65, %v66
    %68 = vmax.xlane.f32.xlu0 %v67
    %v69 = vpop.xlane.xlu0 %68
    %v70 = vsel %vm40, %v59, -inf
    %v71 = vsel %vm40, %v60, -inf
    %v72 = vmax.f32 %v70, %v71
    %73 = vmax.xlane.f32.xlu0 %v72
    %v74 = vpop.xlane.xlu0 %73
    %v75 = vsel %vm40, %v69, -inf
    %v76 = vsel %vm40, %v74, -inf
    %v77 = vmax.f32 %v75, %v76
    %v78 = vsub.f32 %v77, %v53
    %v79 = vmax.f32 %v78, 0.0001
    %v80 = vrcp.pop %v79
    %v81 = vmul.f32 %v79, %v80
    %v82 = vsub.f32 1.0, %v81
    %v83 = vmul.f32 %v80, %v82
    %v84 = vadd.f32 %v80, %v83
    %vm85 = vweird.f32 %v79
    %vm86 = vweird.f32 %v80
    %vm87 = vmor %vm85, %vm86
    %v88 = vsel %vm87, %v80, %v84
    %v89 = vand.u32 2147483647, %v79
    %vm90 = vcmp.eq.f32.partialorder %v89, 8.507059e+37
    %v91 = vand.u32 %v79, 2147483648
    %v92 = vor.u32 1.1754944e-38, %v91
    %v93 = vsel %vm90, %v92, %v88
    %v94 = vmul.f32 1.0, %v93
    %v95 = vsub.f32 0.0, %v53
    %v96 = vmul.f32 %v95, %v94
    %v97 = vsub.f32 %v96, 0.5
    %v100 = vunpack.c.l.s4 839922192
    %v101 = vunpack.c.0.s8 %v100
    %v102 = vperm.slane %v94, %v101
    %v104 = vmul.f32 %v25, %v102
    %v105 = vmul.f32 %v26, %v102
    %v108 = vunpack.c.l.s4 839922192
    %v109 = vunpack.c.0.s8 %v108
    %v110 = vperm.slane %v97, %v109
    %v112 = vadd.f32 %v104, %v110
    %v113 = vadd.f32 %v105, %v110
    %114 = vst [vmem:[#allocation5] sm:$0xff] %v112
    %115 = vst [vmem:[#allocation5 + $0x8] sm:$0xff] %v113
    // Predicated region
    $region10: #{tpu_custom_call.1} parent=1 // pred_check
      _
    $region11: #{tpu_custom_call.1} parent=1 // pred_check_branch
      %117 = sbr.rel (0) target = $region13
    $region12: #{tpu_custom_call.1} parent=1 // pred_region
      %119 = vsyncadd [#allocation4], 0
      %s120 = sshll.u32 [#allocation5], 4
      %s121 = int_to_ptr.vmem [resolvable:$true] %s120
      %s122 = sshll.u32 %s1, 4
      %s123 = int_to_ptr.hbm [resolvable:$true] %s122
      %128 = dma.vmem_to_hbm [thread:$0]  %s121, 256, %s123, [#allocation4], 128, 128, 8
    $region13: #{tpu_custom_call.1} parent=1 // pred_fallthru
      _
    // Predicated region
    $region14: #{tpu_custom_call.1} parent=1 // pred_check
      _
    $region15: #{tpu_custom_call.1} parent=1 // pred_check_branch
      %130 = sbr.rel (0) target = $region17
    $region16: #{tpu_custom_call.1} parent=1 // pred_region
      %132 = dma.done [#allocation4], 256
    $region17: #{tpu_custom_call.1} parent=1 // pred_fallthru
      _
    %133 = vsyncpa [#allocation3], 1
    %134 = vsyncpa [#allocation4], 1

</llo_original>
